<compile_context>
chip_gen: v5e
topology: v5e:2x2
jax: 0.10.0
libtpu: 0.0.40
codegen_flags: <defaults>
</compile_context>

<pallas_src>
import jax
import jax.numpy as jnp
from jax.experimental import pallas as pl
from jax.experimental.pallas import tpu as pltpu

_LANE = 128
# Default time-tile width.  At C=16 / M=8 f32 the double-buffered working set
# at 2048 lanes is <0.5 MiB, far under even v7x's 32 MiB default scoped VMEM,
# while still amortizing the ~0.35us per-grid-step overhead.
_DEFAULT_MAX_TILE_T = 2048


def _round_up(x: int, m: int) -> int:
    return ((x + m - 1) // m) * m


def _spatial_attention_kernel(ut_ref, meg_ref, out_ref):
    # ut_ref:  (M, C)      resident across the whole grid (same block each step)
    # meg_ref: (C, tile_t) one batch element x one time tile (batch dim squeezed)
    # out_ref: (M, tile_t)
    out_ref[...] = jnp.dot(
        ut_ref[...], meg_ref[...], preferred_element_type=jnp.float32
    ).astype(out_ref.dtype)


def spatial_attention(
    ut: jax.Array, meg: jax.Array, *, max_tile_t: int = _DEFAULT_MAX_TILE_T
) -> jax.Array:
    """out[b] = ut @ meg[b]  ==  torch.bmm(Ut.expand(B, -1, -1), meg)."""
    B, C, T = meg.shape
    M, C2 = ut.shape
    assert C == C2, "contraction dims must match"

    # Lane-dense time tiling: tile_t is a multiple of 128 and padded T is a
    # multiple of tile_t, so every block (and every output store) is full.
    tile_t = min(_round_up(T, _LANE), _round_up(max_tile_t, _LANE))
    t_pad = _round_up(T, tile_t)
    if t_pad != T:
        meg = jnp.pad(meg, ((0, 0), (0, 0), (0, t_pad - T)))

    grid = (B, t_pad // tile_t)

    itemsize = jnp.dtype(meg.dtype).itemsize
    cost = pl.CostEstimate(
        flops=2 * B * M * C * t_pad,
        transcendentals=0,
        bytes_accessed=itemsize * (B * C * t_pad + B * M * t_pad)
        + jnp.dtype(ut.dtype).itemsize * M * C,
    )

    out = pl.pallas_call(
        _spatial_attention_kernel,
        out_shape=jax.ShapeDtypeStruct((B, M, t_pad), meg.dtype),
        grid=grid,
        in_specs=[
            # Small shared weight: same full block at every grid step, stays
            # resident in VMEM (M, C equal the full array dims).
            pl.BlockSpec((M, C), lambda b, t: (0, 0)),
            # One (batch, time-tile) slab of meg per grid step; the size-1
            # batch dim is squeezed so the kernel sees a plain (C, tile_t) ref.
            pl.BlockSpec((pl.Squeezed(), C, tile_t), lambda b, t: (b, 0, t)),
        ],
        out_specs=pl.BlockSpec((pl.Squeezed(), M, tile_t), lambda b, t: (b, 0, t)),
        compiler_params=pltpu.CompilerParams(
            # Both grid axes are independent -> shardable across megacore
            # TensorCores (2 TCs on v7x) and freely pipelined.
            dimension_semantics=("parallel", "parallel"),
        ),
        cost_estimate=cost,
    )(ut, meg)

    if t_pad != T:
        out = out[:, :, :T]
    return out


if __name__ == "__main__":
    # Deterministic synthetic parameters / inputs (no checkpoint load).
    key = jax.random.PRNGKey(0)
    k_ut, k_meg = jax.random.split(key)

    # batch, MEG channels, output rows, time steps.
    # T is deliberately NOT a multiple of 128 to exercise the padding path.
    B, C, M, T = 2, 16, 8, 300

    # Udef.pth would be (C, M); __init__ transposes it -> Ut is (M, C).
    ut = jax.random.normal(k_ut, (M, C), dtype=jnp.float32)
    meg = jax.random.normal(k_meg, (B, C, T), dtype=jnp.float32)

    # Small tile here so the multi-step (pipelined) path is exercised even at
    # this toy T; production calls use the 2048-wide default.
    out = jax.block_until_ready(spatial_attention(ut, meg, max_tile_t=128))

    # Reference check against plain JAX bmm semantics.
    ref = jnp.einsum("mc,bct->bmt", ut, meg)
    assert out.shape == (B, M, T)
    assert jnp.allclose(out, ref, atol=1e-5, rtol=1e-5)

    # Also sanity-check the default (single-tile-per-batch) tiling path.
    out2 = jax.block_until_ready(spatial_attention(ut, meg))
    assert jnp.allclose(out2, ref, atol=1e-5, rtol=1e-5)

    print("KERNEL_OK")
</pallas_src>

<mosaic_0001>
module attributes {stable_mosaic.version = 11 : i64} {
  func.func @_spatial_attention_kernel(%arg0: i32, %arg1: i32, %arg2: memref<8x16xf32, #tpu.memory_space<vmem>>, %arg3: memref<1x16x128xf32, #tpu.memory_space<vmem>>, %arg4: memref<1x8x128xf32, #tpu.memory_space<vmem>>) attributes {dimension_semantics = [#tpu.dimension_semantics<parallel>, #tpu.dimension_semantics<parallel>], iteration_bounds = array<i64: 2, 3>, scalar_prefetch = 0 : i64, scratch_operands = 0 : i64, tpu.core_type = #tpu.core_type<tc>, window_params = [{pipeline_mode = #tpu.pipeline_mode<synchronous>, transform_indices = @transform_0, window_bounds = array<i64: 8, 16>}, {transform_indices = @transform_1, window_bounds = array<i64: 1, 16, 128>}, {transform_indices = @transform_2, window_bounds = array<i64: 1, 8, 128>}]} {
    %c0 = arith.constant 0 : index
    %c0_0 = arith.constant 0 : index
    %0 = vector.load %arg2[%c0, %c0_0] : memref<8x16xf32, #tpu.memory_space<vmem>>, vector<8x16xf32>
    %c0_1 = arith.constant 0 : index
    %c0_2 = arith.constant 0 : index
    %c0_3 = arith.constant 0 : index
    %1 = vector.load %arg3[%c0_1, %c0_2, %c0_3] : memref<1x16x128xf32, #tpu.memory_space<vmem>>, vector<1x16x128xf32>
    %2 = vector.shape_cast %1 : vector<1x16x128xf32> to vector<16x128xf32>
    %cst = arith.constant dense<0.000000e+00> : vector<8x128xf32>
    %3 = tpu.matmul %0, %2, %cst {dimension_numbers = #tpu.dot_dimension_numbers<[1], [0], [0], [1], [0, 0, 1, 1], [], []>} : vector<8x16xf32>, vector<16x128xf32>, vector<8x128xf32> -> vector<8x128xf32>
    %c0_4 = arith.constant 0 : index
    %c0_5 = arith.constant 0 : index
    %c0_6 = arith.constant 0 : index
    %4 = vector.load %arg4[%c0_4, %c0_5, %c0_6] : memref<1x8x128xf32, #tpu.memory_space<vmem>>, vector<1x8x128xf32>
    %5 = vector.shape_cast %4 : vector<1x8x128xf32> to vector<8x128xf32>
    %6 = vector.shape_cast %3 : vector<8x128xf32> to vector<1x8x128xf32>
    tpu.vector_store %arg4[%c0_4, %c0_5, %c0_6], %6 {strides = array<i32>} : memref<1x8x128xf32, #tpu.memory_space<vmem>>, vector<1x8x128xf32>,
    return
  }
  func.func @transform_0(%arg0: i32, %arg1: i32) -> (i32, i32) {
    %c0_i32 = arith.constant 0 : i32
    %c0_i32_0 = arith.constant 0 : i32
    %c0_i32_1 = arith.constant 0 : i32
    return %c0_i32, %c0_i32_0 : i32, i32
  }
  func.func @transform_1(%arg0: i32, %arg1: i32) -> (i32, i32, i32) {
    %c0_i32 = arith.constant 0 : i32
    %c0_i32_0 = arith.constant 0 : i32
    return %arg0, %c0_i32, %arg1 : i32, i32, i32
  }
  func.func @transform_2(%arg0: i32, %arg1: i32) -> (i32, i32, i32) {
    %c0_i32 = arith.constant 0 : i32
    %c0_i32_0 = arith.constant 0 : i32
    return %arg0, %c0_i32, %arg1 : i32, i32, i32
  }
}

</mosaic_0001>

<llo_original>
// kernel: tpu_custom_call.1
$region0: #{tpu_custom_call.1}
  #allocation0 [shape = 'u32[]', space=smem, size = 0x4, offset = 0x4, fixed_abs, tag = 'smem constant byte address 0x4 - core index']
  #allocation1 [shape = 'u32[72,128]{1,0:T(1,128)}', space=vmem, size = 0x9000, scoped, tag = 'internal scratch']
  %s0 = inlined_call_operand.hbm [shape: f32[8,16], index: 0, kind: input, shape index: {}]
  %s1 = inlined_call_operand.hbm [shape: f32[2,16,384], index: 1, kind: input, shape index: {}]
  %s2 = inlined_call_operand.hbm [shape: f32[2,8,384], index: 2, kind: output, shape index: {}]
  %s3 = sld [smem:[#allocation0]]
  $region49: #{tpu_custom_call.1} parent=0
    _
  %s5 = ssub.s32 1, %s3
  %s6 = scalar_select 0, %s5, %s3
  $region1: #{tpu_custom_call.1} parent=0
    #allocation2 [shape = 'u8[4096]{0}', space=vmem, size = 0x1000, scoped, tag = 'input window, operand 0, single buffered']
    #allocation3 [shape = 's32[2]{0}', space=sflag, size = 0x8, scoped, tag = 'scoped memory for tpu_custom_call.1']
    #allocation4 [shape = 's32[2]{0}', space=sflag, size = 0x8, scoped, tag = 'scoped memory for tpu_custom_call.1']
    #allocation5 [shape = 'u8[16384]{0}', space=vmem, size = 0x4000, scoped, tag = 'input window, operand 1']
    #allocation6 [shape = 's32[2]{0}', space=sflag, size = 0x8, scoped, tag = 'scoped memory for tpu_custom_call.1']
    #allocation7 [shape = 'u8[8192]{0}', space=vmem, size = 0x2000, scoped, tag = 'output window, operand 0']
    %7 = vsyncpa [#allocation3], 0
    %8 = vsyncpa [#allocation6], 0
    %s9 = scalar_lea.sflag [#allocation6], 1
    %10 = vsyncpa %s9, 0
    %11 = vsyncpa [#allocation4], 0
    %s12 = scalar_lea.sflag [#allocation4], 1
    %13 = vsyncpa %s12, 0
    loop: start=0, step=1, limit=8
    $region2: #{tpu_custom_call.1} parent=1 // loop_pre_header
      _
    $region3: #{tpu_custom_call.1} parent=1 // loop_header
      %s15 = sphi 0, %s19
      %p16 = scmp.ge.s32.totalorder %s15, 8
      %s22 = sphi 0, %s34
      %s23 = sphi 0, %s30
      %s24 = sphi 0, %s22
      %s25 = sphi 0, %s23
      %s26 = sphi 0, %s24
      %s27 = sphi 0, %s25
      %s35 = sphi 0, %s35
      %s37 = sphi 0, %s35
      %s38 = sphi 0, %s37
      %s52 = sphi 0, %s38
      %s60 = sphi 0, %s62
      %s63 = sphi 0, %s60
      %s64 = sphi 0, %s63
      %s80 = sphi 0, %s64
      %s88 = sphi 0, %s90
      %s91 = sphi 0, %s88
      %s92 = sphi 0, %s91
      %s108 = sphi 0, %s92
    $region4: #{tpu_custom_call.1} parent=1 // loop_header_branch
      %18 = sbr.rel (%p16) target = $region8
    $region5: #{tpu_custom_call.1} parent=1 // loop_body
      %s20 = ssub.s32 %s15, 1
      %s21 = ssub.s32 %s15, 2
      %s28 = sadd.s32 1, %s23
      %p29 = scmp.ge.s32.totalorder %s28, 3
      %s30 = scalar_select %p29, 0, %s28
      %s31 = sadd.s32 1, %s22
      %s32 = scalar_select %p29, %s31, %s22
      %p33 = scmp.ge.s32.totalorder %s32, 2
      %s34 = scalar_select %p33, 0, %s32
      %s36 = sadd.s32 %s35, 1
      %p39 = scmp.eq.s32.totalorder %s15, 5
      %p40 = scmp.ne.s32.totalorder %s35, %s37
      %p41 = scmp.eq.s32.totalorder %s15, 0
      %p42 = por %p40, %p41
      %p43 = scmp.ne.s32.totalorder %s35, %s37
      %p44 = scmp.eq.s32.totalorder %s20, 5
      %p45 = por %p43, %p44
      %p46 = scmp.ne.s32.totalorder %s37, %s38
      %p47 = scmp.eq.s32.totalorder %s20, 0
      %p48 = por %p46, %p47
      %p49 = scmp.ne.s32.totalorder %s37, %s38
      %p50 = scmp.eq.s32.totalorder %s21, 5
      %p51 = por %p49, %p50
      %p53 = scmp.ne.s32.totalorder %s38, %s52
      %p54 = scmp.eq.s32.totalorder %s21, 0
      %p55 = por %p53, %p54
      %s56 = ssub.s32 %s22, %s34
      %s57 = ssub.s32 %s23, %s30
      %s58 = sor.u32 %s56, %s57
      %p59 = scmp.eq.s32.totalorder %s58, 0
      %s61 = sadd.s32 %s60, 1
      %s62 = scalar_select %p59, %s60, %s61
      %p65 = pneg %p59
      %p66 = scmp.eq.s32.totalorder %s15, 5
      %p67 = por %p65, %p66
      %p68 = scmp.ne.s32.totalorder %s60, %s63
      %p69 = scmp.eq.s32.totalorder %s15, 0
      %p70 = por %p68, %p69
      %p71 = scmp.ne.s32.totalorder %s60, %s63
      %p72 = scmp.eq.s32.totalorder %s20, 5
      %p73 = por %p71, %p72
      %p74 = scmp.ne.s32.totalorder %s63, %s64
      %p75 = scmp.eq.s32.totalorder %s20, 0
      %p76 = por %p74, %p75
      %p77 = scmp.ne.s32.totalorder %s63, %s64
      %p78 = scmp.eq.s32.totalorder %s21, 5
      %p79 = por %p77, %p78
      %p81 = scmp.ne.s32.totalorder %s64, %s80
      %p82 = scmp.eq.s32.totalorder %s21, 0
      %p83 = por %p81, %p82
      %s84 = ssub.s32 %s22, %s34
      %s85 = ssub.s32 %s23, %s30
      %s86 = sor.u32 %s84, %s85
      %p87 = scmp.eq.s32.totalorder %s86, 0
      %s89 = sadd.s32 %s88, 1
      %s90 = scalar_select %p87, %s88, %s89
      %p93 = pneg %p87
      %p94 = scmp.eq.s32.totalorder %s15, 5
      %p95 = por %p93, %p94
      %p96 = scmp.ne.s32.totalorder %s88, %s91
      %p97 = scmp.eq.s32.totalorder %s15, 0
      %p98 = por %p96, %p97
      %p99 = scmp.ne.s32.totalorder %s88, %s91
      %p100 = scmp.eq.s32.totalorder %s20, 5
      %p101 = por %p99, %p100
      %p102 = scmp.ne.s32.totalorder %s91, %s92
      %p103 = scmp.eq.s32.totalorder %s20, 0
      %p104 = por %p102, %p103
      %p105 = scmp.ne.s32.totalorder %s91, %s92
      %p106 = scmp.eq.s32.totalorder %s21, 5
      %p107 = por %p105, %p106
      %p109 = scmp.ne.s32.totalorder %s92, %s108
      %p110 = scmp.eq.s32.totalorder %s21, 0
      %p111 = por %p109, %p110
      %p112 = scmp.le.s32.totalorder 1, %s15
      %p113 = scmp.lt.s32.totalorder %s15, 7
      %p114 = pnand %p112, %p113
      %p115 = pneg %p114
      // Predicated region
      $region9: #{tpu_custom_call.1} parent=5 // pred_check
        _
      $region10: #{tpu_custom_call.1} parent=5 // pred_check_branch
        %117 = sbr.rel (%p114) target = $region12
      $region11: #{tpu_custom_call.1} parent=5 // pred_region
        %s118 = ssub.s32 %s15, 1
        // Predicated region
        $region13: #{tpu_custom_call.1} parent=11 // pred_check
          %p119 = pneg %p48
        $region14: #{tpu_custom_call.1} parent=11 // pred_check_branch
          %121 = sbr.rel (%p119) target = $region16
        $region15: #{tpu_custom_call.1} parent=11 // pred_region
          %123 = vsyncadd [#allocation3], 0
          %s125 = sshll.u32 %s0, 4
          %s126 = int_to_ptr.hbm [resolvable:$true] %s125
          %s127 = sshll.u32 [#allocation2], 4
          %s128 = int_to_ptr.vmem [resolvable:$true] %s127
          %130 = dma.hbm_to_vmem [thread:$0]  %s126, 128, %s128, [#allocation3]
        $region16: #{tpu_custom_call.1} parent=11 // pred_fallthru
          _
      $region12: #{tpu_custom_call.1} parent=5 // pred_fallthru
        _
      %p131 = scmp.lt.s32.totalorder %s15, 6
      // Predicated region
      $region17: #{tpu_custom_call.1} parent=5 // pred_check
        %p132 = pneg %p131
      $region18: #{tpu_custom_call.1} parent=5 // pred_check_branch
        %134 = sbr.rel (%p132) target = $region20
      $region19: #{tpu_custom_call.1} parent=5 // pred_region
        // Predicated region
        $region21: #{tpu_custom_call.1} parent=19 // pred_check
          %p135 = pneg %p70
        $region22: #{tpu_custom_call.1} parent=19 // pred_check_branch
          %137 = sbr.rel (%p135) target = $region24
        $region23: #{tpu_custom_call.1} parent=19 // pred_region
          %s138 = sand.u32 %s60, 1
          %s139 = scalar_lea.sflag [#allocation6], %s138
          %s140 = sand.u32 %s60, 1
          %s141 = smul.addr %s140, 16
          %s142 = scalar_lea.vmem [#allocation5], %s141
          %144 = vsyncadd %s139, 0
          %s145 = smul.addr %s22, 6
          %s146 = sadd.s32 %s23, %s145
          %s147 = smul.addr %s146, 8
          %s148 = scalar_lea.hbm %s1, %s147
          %s149 = sshll.u32 %s148, 4
          %s150 = int_to_ptr.hbm [resolvable:$true] %s149
          %s151 = sshll.u32 %s142, 4
          %s152 = int_to_ptr.vmem [resolvable:$true] %s151
          %157 = dma.hbm_to_vmem [thread:$0]  %s150, 256, %s152, %s139, 384, 128, 8
        $region24: #{tpu_custom_call.1} parent=19 // pred_fallthru
          _
      $region20: #{tpu_custom_call.1} parent=5 // pred_fallthru
        _
      %p158 = scmp.le.s32.totalorder 1, %s15
      %p159 = scmp.lt.s32.totalorder %s15, 7
      %p160 = pnand %p158, %p159
      %p161 = pneg %p160
      // Predicated region
      $region25: #{tpu_custom_call.1} parent=5 // pred_check
        _
      $region26: #{tpu_custom_call.1} parent=5 // pred_check_branch
        %163 = sbr.rel (%p160) target = $region28
      $region27: #{tpu_custom_call.1} parent=5 // pred_region
        %s164 = ssub.s32 %s15, 1
        // Predicated region
        $region29: #{tpu_custom_call.1} parent=27 // pred_check
          %p165 = pneg %p48
        $region30: #{tpu_custom_call.1} parent=27 // pred_check_branch
          %167 = sbr.rel (%p165) target = $region32
        $region31: #{tpu_custom_call.1} parent=27 // pred_region
          %169 = dma.done [#allocation3], 128
        $region32: #{tpu_custom_call.1} parent=27 // pred_fallthru
          _
        %s170 = sand.u32 %s63, 1
        %s171 = scalar_lea.sflag [#allocation6], %s170
        %s172 = sand.u32 %s63, 1
        %s173 = smul.addr %s172, 16
        %s174 = scalar_lea.vmem [#allocation5], %s173
        // Predicated region
        $region33: #{tpu_custom_call.1} parent=27 // pred_check
          %p175 = pneg %p76
        $region34: #{tpu_custom_call.1} parent=27 // pred_check_branch
          %177 = sbr.rel (%p175) target = $region36
        $region35: #{tpu_custom_call.1} parent=27 // pred_region
          %179 = dma.done %s171, 256
        $region36: #{tpu_custom_call.1} parent=27 // pred_fallthru
          _
        %p180 = pneg %p48
        %p181 = pneg %p45
        %s182 = sand.u32 %s63, 1
        %s183 = scalar_lea.sflag [#allocation6], %s182
        %s184 = sand.u32 %s63, 1
        %s185 = smul.addr %s184, 16
        %s186 = scalar_lea.vmem [#allocation5], %s185
        %p187 = pneg %p76
        %p188 = pneg %p73
        %p189 = pneg %p104
        %p190 = pneg %p101
        %s191 = sand.u32 %s91, 1
        %s192 = scalar_lea.sflag [#allocation4], %s191
        %s193 = sand.u32 %s91, 1
        %s194 = smul.addr %s193, 8
        %s195 = scalar_lea.vmem [#allocation7], %s194
        %v196 = vld [vmem:[#allocation2] sm:$0xff]
        %v197 = vld [vmem:[%s174] sm:$0xff]
        %v198 = vld [vmem:[%s174 + $0x8] sm:$0xff]
        %vm199 = vcmask 130048
        %v201 = vsel %vm199, %v196, 0
        %203 = vmatpush.msra.mxu0 0.0
        %204 = vmatpush.msra.mxu0 0.0
        %205 = vmatpush.msra.mxu0 0.0
        %206 = vmatpush.msra.mxu0 0.0
        %207 = vmatpush.msra.mxu0 0.0
        %208 = vmatpush.msra.mxu0 0.0
        %209 = vmatpush.msra.mxu0 0.0
        %210 = vmatpush.msra.mxu0 0.0
        %211 = vmatpush.msra.mxu0 0.0
        %212 = vmatpush.msra.mxu0 0.0
        %213 = vmatpush.msra.mxu0 0.0
        %214 = vmatpush.msra.mxu0 0.0
        %215 = vmatpush.msra.mxu0 0.0
        %216 = vmatpush.msra.mxu0 0.0
        %217 = vmatpush.msra.mxu0 %v198
        %218 = vmatpush.msra.mxu0 %v197
        %219 = vmatmul.f32.gmra.mxu0 %v201
        %v220 = vpop.f32.mrf.mxu0
        %v221 = vadd.f32 0.0, %v220
        %222 = vdwg.mxu0
        %223 = vst [vmem:[%s195] sm:$0xff] %v221
        %s224 = sand.u32 %s91, 1
        %s225 = scalar_lea.sflag [#allocation4], %s224
        %s226 = sand.u32 %s91, 1
        %s227 = smul.addr %s226, 8
        %s228 = scalar_lea.vmem [#allocation7], %s227
        // Predicated region
        $region37: #{tpu_custom_call.1} parent=27 // pred_check
          %p229 = pneg %p101
        $region38: #{tpu_custom_call.1} parent=27 // pred_check_branch
          %231 = sbr.rel (%p229) target = $region40
        $region39: #{tpu_custom_call.1} parent=27 // pred_region
          %233 = vsyncadd %s225, 0
          %s234 = smul.addr %s24, 3
          %s235 = sadd.s32 %s25, %s234
          %s236 = smul.addr %s235, 8
          %s237 = scalar_lea.hbm %s2, %s236
          %s239 = sshll.u32 %s228, 4
          %s240 = int_to_ptr.vmem [resolvable:$true] %s239
          %s241 = sshll.u32 %s237, 4
          %s242 = int_to_ptr.hbm [resolvable:$true] %s241
          %244 = dma.vmem_to_hbm [thread:$0]  %s240, 128, %s242, %s225
        $region40: #{tpu_custom_call.1} parent=27 // pred_fallthru
          _
      $region28: #{tpu_custom_call.1} parent=5 // pred_fallthru
        _
      %p245 = scmp.le.s32.totalorder 2, %s15
      // Predicated region
      $region41: #{tpu_custom_call.1} parent=5 // pred_check
        %p246 = pneg %p245
      $region42: #{tpu_custom_call.1} parent=5 // pred_check_branch
        %248 = sbr.rel (%p246) target = $region44
      $region43: #{tpu_custom_call.1} parent=5 // pred_region
        %s249 = ssub.s32 %s15, 2
        // Predicated region
        $region45: #{tpu_custom_call.1} parent=43 // pred_check
          %p250 = pneg %p107
        $region46: #{tpu_custom_call.1} parent=43 // pred_check_branch
          %252 = sbr.rel (%p250) target = $region48
        $region47: #{tpu_custom_call.1} parent=43 // pred_region
          %s253 = sand.u32 %s92, 1
          %s254 = scalar_lea.sflag [#allocation4], %s253
          %s255 = sand.u32 %s92, 1
          %s256 = smul.addr %s255, 8
          %s257 = scalar_lea.vmem [#allocation7], %s256
          %259 = dma.done %s254, 128
        $region48: #{tpu_custom_call.1} parent=43 // pred_fallthru
          _
      $region44: #{tpu_custom_call.1} parent=5 // pred_fallthru
        _
    $region6: #{tpu_custom_call.1} parent=1 // loop_footer
      %s19 = sadd.s32 1, %s15
    $region7: #{tpu_custom_call.1} parent=1 // loop_footer_branch
      %14 = sbr.rel target = $region3
    $region8: #{tpu_custom_call.1} parent=1 // loop_exit
      _
    %260 = vsyncpa [#allocation3], 1
    %s261 = scalar_lea.sflag [#allocation3], 1
    %262 = vsyncpa %s261, 1
    %263 = vsyncpa [#allocation6], 1
    %s264 = scalar_lea.sflag [#allocation6], 1
    %265 = vsyncpa %s264, 1
    %266 = vsyncpa [#allocation4], 1
    %s267 = scalar_lea.sflag [#allocation4], 1
    %268 = vsyncpa %s267, 1

</llo_original>
